<compile_context>
chip_gen: v5e
topology: v5e:2x2
jax: 0.10.0
libtpu: 0.0.40
codegen_flags: <defaults>
</compile_context>

<pallas_src>
import functools

import jax
import jax.numpy as jnp
from jax.experimental import pallas as pl
from jax.experimental.pallas import tpu as pltpu

LANE = 128


def _round_up(n, m):
    return ((n + m - 1) // m) * m


def _cdiv(a, b):
    return (a + b - 1) // b


def _default_param_dtype():
    """bf16 weights on v6e/v7x (native bf16 MXU, halves weight HBM/VMEM);
    f32 on v5-and-older (no bf16 VPU path -> the astype casts would just add
    VPU convert work on a kernel that is not compute bound)."""
    try:
        kind = jax.devices()[0].device_kind.lower()
    except Exception:
        return jnp.float32
    if any(tag in kind for tag in ("v2", "v3", "v4", "v5")):
        return jnp.float32
    return jnp.bfloat16


def _batch_tiling(B, batch_tile):
    """Pick (TB, PB, steps).

    Large tiles amortize the ~0.35us per-grid-step pipeline overhead (the
    per-step DMA is tiny), and when more than one step is needed the step
    count is forced even so v7x's two TensorCores get a balanced split of the
    "parallel" batch axis.
    """
    B = max(int(B), 1)
    TB0 = min(batch_tile, _round_up(B, 8))
    steps = _cdiv(B, TB0)
    if steps > 1 and steps % 2 == 1:
        steps += 1                       # even split across v7x's 2 TCs
    TB = _round_up(_cdiv(B, steps), 8)   # sublane-aligned batch tile
    PB = TB * steps
    return TB, PB, steps


def actor_kernel(x_ref, w1_ref, w2_ref, w3_ref, bias_ref, o_ref):
    """One batch tile of the 3-layer MLP. Hidden feature dims are pre-padded
    to multiples of 128 lanes (zero padding contributes nothing); the output
    is stored unpadded (action_dim lanes) to avoid writeback amplification."""
    w_dtype = w1_ref.dtype
    h1w = w1_ref.shape[1]
    h2w = w2_ref.shape[1]
    aw = o_ref.shape[1]                  # true action_dim

    x = x_ref[...].astype(w_dtype)
    b = bias_ref[...]                    # (8, 128k) f32: rows = b1, b2, b3, max_action

    # layer 1 + ReLU (f32 accumulate on the MXU)
    h1 = jnp.dot(x, w1_ref[...], preferred_element_type=jnp.float32) + b[0:1, :h1w]
    h1 = jnp.maximum(h1, 0.0)
    # layer 2 + ReLU
    h2 = jnp.dot(h1.astype(w_dtype), w2_ref[...],
                 preferred_element_type=jnp.float32) + b[1:2, :h2w]
    h2 = jnp.maximum(h2, 0.0)
    # layer 3 + tanh, scaled by max_action; slice to the real action lanes
    z = jnp.dot(h2.astype(w_dtype), w3_ref[...],
                preferred_element_type=jnp.float32)
    z = z[:, :aw] + b[2:3, :aw]
    o_ref[...] = (b[3:4, :aw] * jnp.tanh(z)).astype(o_ref.dtype)


@functools.partial(jax.jit,
                   static_argnames=("action_dim", "batch_tile", "single_buffer"))
def _actor_forward_impl(state, w1, w2, w3, biases, *, action_dim, batch_tile,
                        single_buffer):
    B, state_dim = state.shape
    TB, PB, steps = _batch_tiling(B, batch_tile)
    x = state if PB == B else jnp.pad(state, ((0, PB - B), (0, 0)))

    def resident(shape):
        # Constant index_map -> operand never re-DMAs; request a single VMEM
        # buffer so resident weights don't pay for double-buffering (matters
        # as hidden sizes grow, esp. v7x's 64 MiB VMEM).
        if single_buffer:
            return pl.BlockSpec(shape, lambda i: (0, 0),
                                pipeline_mode=pl.Buffered(1))
        return pl.BlockSpec(shape, lambda i: (0, 0))

    out = pl.pallas_call(
        actor_kernel,
        out_shape=jax.ShapeDtypeStruct((PB, action_dim), jnp.float32),
        grid_spec=pltpu.PrefetchScalarGridSpec(
            num_scalar_prefetch=0,
            grid=(steps,),
            in_specs=[
                # state streams through the pipeline, one batch tile per step
                pl.BlockSpec((TB, state_dim), lambda i: (i, 0)),
                # weights + packed biases stay VMEM-resident across grid steps
                resident(w1.shape),
                resident(w2.shape),
                resident(w3.shape),
                resident(biases.shape),
            ],
            # last block dim == full array dim (action_dim) -> legal, and the
            # kernel writes only real action lanes (no 32x write amplification)
            out_specs=pl.BlockSpec((TB, action_dim), lambda i: (i, 0)),
        ),
        compiler_params=pltpu.CompilerParams(
            dimension_semantics=("parallel",)),   # v7x: shard batch over 2 TCs
    )(x, w1, w2, w3, biases)

    return out if PB == B else out[:B]


_SINGLE_BUFFER_RESIDENT = True   # flipped off if pl.Buffered(1) is rejected


def actor_forward(state, params, *, batch_tile=1024):
    """state: (B, state_dim) f32. Returns (B, action_dim) f32."""
    global _SINGLE_BUFFER_RESIDENT
    args = (state, params["w1"], params["w2"], params["w3"], params["biases"])
    kwargs = dict(action_dim=params["action_dim"], batch_tile=batch_tile)
    if _SINGLE_BUFFER_RESIDENT:
        try:
            return _actor_forward_impl(*args, single_buffer=True, **kwargs)
        except Exception:
            # This jax build does not accept single-buffered resident operands;
            # fall back to default (double-buffered) pipelining.
            _SINGLE_BUFFER_RESIDENT = False
    return _actor_forward_impl(*args, single_buffer=False, **kwargs)


def init_actor_params(key, state_dim, action_dim, hidden_layers, max_action,
                      param_dtype=None):
    """Init mimicking nn.Linear's U(-1/sqrt(fan_in), 1/sqrt(fan_in)).

    Weights are stored as (in_features, out_features), zero-padded so every
    out-feature dim is a multiple of 128 lanes (paid once, offline).  Biases
    and max_action are packed into a single (8, 128k) f32 array.  Unpadded
    copies are kept under params["ref"] for the pure-JAX reference.
    """
    if param_dtype is None:
        param_dtype = _default_param_dtype()

    dims = [state_dim, hidden_layers[0], hidden_layers[1], action_dim]
    pdims = [state_dim] + [_round_up(d, LANE) for d in dims[1:]]
    keys = jax.random.split(key, 6)

    params = {"action_dim": int(action_dim)}
    ref = {}
    ws_padded, bs = [], []
    for i in range(3):
        fan_in, fan_out = dims[i], dims[i + 1]
        bound = 1.0 / (fan_in ** 0.5)
        w = jax.random.uniform(keys[2 * i], (fan_in, fan_out), jnp.float32,
                               -bound, bound)
        b = jax.random.uniform(keys[2 * i + 1], (fan_out,), jnp.float32,
                               -bound, bound)
        w_p = jnp.zeros((pdims[i], pdims[i + 1]), jnp.float32)
        w_p = w_p.at[:fan_in, :fan_out].set(w)
        ws_padded.append(w_p)
        bs.append(b)
        ref[f"w{i+1}"] = w
        ref[f"b{i+1}"] = b.reshape(1, fan_out)

    # get_tensor(max_action): accept scalar or length-action_dim array
    max_a = jnp.broadcast_to(
        jnp.asarray(max_action, jnp.float32).reshape(-1), (action_dim,))
    ref["max_action"] = max_a.reshape(1, action_dim)

    # Pack b1, b2, b3, max_action into one lane-aligned (8, pack_w) f32 array.
    pack_w = max(pdims[1:])
    bias_pack = jnp.zeros((8, pack_w), jnp.float32)
    bias_pack = bias_pack.at[0, :dims[1]].set(bs[0])
    bias_pack = bias_pack.at[1, :dims[2]].set(bs[1])
    bias_pack = bias_pack.at[2, :dims[3]].set(bs[2])
    bias_pack = bias_pack.at[3, :dims[3]].set(max_a)

    params["w1"] = ws_padded[0].astype(param_dtype)
    params["w2"] = ws_padded[1].astype(param_dtype)
    params["w3"] = ws_padded[2].astype(param_dtype)
    params["biases"] = bias_pack            # kept f32 (f32 bias add + elementwise)
    params["ref"] = ref
    return params


def actor_reference(state, params):
    """Pure-JAX reference (unpadded f32 weights) for verification."""
    r = params["ref"]
    h1 = jnp.maximum(state @ r["w1"] + r["b1"], 0.0)
    h2 = jnp.maximum(h1 @ r["w2"] + r["b2"], 0.0)
    return r["max_action"] * jnp.tanh(h2 @ r["w3"] + r["b3"])


if __name__ == "__main__":
    key = jax.random.PRNGKey(0)
    k_param, k_state, k_state_big = jax.random.split(key, 3)

    state_dim = 8
    action_dim = 4
    hidden_layers = [32, 32]
    max_action = jnp.full((action_dim,), 2.0, jnp.float32)

    # f32 parameters: tight-tolerance check of the kernel itself.
    params_f32 = init_actor_params(k_param, state_dim, action_dim, hidden_layers,
                                   max_action, param_dtype=jnp.float32)

    # Tiny batch (matches the original spec's scale).
    state = jax.random.normal(k_state, (2, state_dim), jnp.float32)
    out = jax.block_until_ready(actor_forward(state, params_f32))
    ref = actor_reference(state, params_f32)
    assert out.shape == (2, action_dim)
    assert jnp.allclose(out, ref, atol=1e-5, rtol=1e-5)

    # Larger ragged batch: exercises batch padding, weight residency,
    # the jit'ed pad/kernel/slice path, and the batch grid.
    state_big = jax.random.normal(k_state_big, (300, state_dim), jnp.float32)
    out_big = jax.block_until_ready(actor_forward(state_big, params_f32))
    ref_big = actor_reference(state_big, params_f32)
    assert out_big.shape == (300, action_dim)
    assert jnp.allclose(out_big, ref_big, atol=1e-5, rtol=1e-5)

    # Device-tuned weight dtype (bf16 on v6e/v7x, f32 on v5e/older): check the
    # bf16 path too when it is the recommended default for this device.
    auto_dtype = _default_param_dtype()
    if jnp.dtype(auto_dtype) != jnp.dtype(jnp.float32):
        params_auto = init_actor_params(k_param, state_dim, action_dim,
                                        hidden_layers, max_action,
                                        param_dtype=auto_dtype)
        out_bf = jax.block_until_ready(actor_forward(state_big, params_auto))
        assert out_bf.shape == (300, action_dim)
        assert jnp.allclose(out_bf, ref_big, atol=5e-2, rtol=5e-2)

    print("KERNEL_OK")
</pallas_src>

<mosaic_0001>
module attributes {stable_mosaic.version = 11 : i64} {
  func.func @actor_kernel(%arg0: i32, %arg1: memref<8x8xf32, #tpu.memory_space<vmem>>, %arg2: memref<8x128xf32, #tpu.memory_space<vmem>>, %arg3: memref<128x128xf32, #tpu.memory_space<vmem>>, %arg4: memref<128x128xf32, #tpu.memory_space<vmem>>, %arg5: memref<8x128xf32, #tpu.memory_space<vmem>>, %arg6: memref<8x4xf32, #tpu.memory_space<vmem>>) attributes {dimension_semantics = [#tpu.dimension_semantics<parallel>], iteration_bounds = array<i64: 1>, scalar_prefetch = 0 : i64, scratch_operands = 0 : i64, tpu.core_type = #tpu.core_type<tc>, window_params = [{transform_indices = @transform_0, window_bounds = array<i64: 8, 8>}, {pipeline_mode = #tpu.pipeline_mode<synchronous>, transform_indices = @transform_1, window_bounds = array<i64: 8, 128>}, {pipeline_mode = #tpu.pipeline_mode<synchronous>, transform_indices = @transform_2, window_bounds = array<i64: 128, 128>}, {pipeline_mode = #tpu.pipeline_mode<synchronous>, transform_indices = @transform_3, window_bounds = array<i64: 128, 128>}, {pipeline_mode = #tpu.pipeline_mode<synchronous>, transform_indices = @transform_4, window_bounds = array<i64: 8, 128>}, {transform_indices = @transform_5, window_bounds = array<i64: 8, 4>}]} {
    %c0 = arith.constant 0 : index
    %c0_0 = arith.constant 0 : index
    %0 = vector.load %arg1[%c0, %c0_0] : memref<8x8xf32, #tpu.memory_space<vmem>>, vector<8x8xf32>
    %c0_1 = arith.constant 0 : index
    %c0_2 = arith.constant 0 : index
    %1 = vector.load %arg5[%c0_1, %c0_2] : memref<8x128xf32, #tpu.memory_space<vmem>>, vector<8x128xf32>
    %c0_3 = arith.constant 0 : index
    %c0_4 = arith.constant 0 : index
    %2 = vector.load %arg2[%c0_3, %c0_4] : memref<8x128xf32, #tpu.memory_space<vmem>>, vector<8x128xf32>
    %cst = arith.constant dense<0.000000e+00> : vector<8x128xf32>
    %3 = tpu.matmul %0, %2, %cst {dimension_numbers = #tpu.dot_dimension_numbers<[1], [0], [0], [1], [0, 0, 1, 1], [], []>} : vector<8x8xf32>, vector<8x128xf32>, vector<8x128xf32> -> vector<8x128xf32>
    %4 = vector.extract_strided_slice %1 {offsets = [0, 0], sizes = [1, 128], strides = [1, 1]} : vector<8x128xf32> to vector<1x128xf32>
    %5 = vector.broadcast %4 : vector<1x128xf32> to vector<8x128xf32>
    %6 = arith.addf %3, %5 : vector<8x128xf32>
    %cst_5 = arith.constant 0.000000e+00 : f32
    %7 = vector.broadcast %cst_5 : f32 to vector<8x128xf32>
    %8 = arith.maximumf %6, %7 : vector<8x128xf32>
    %c0_6 = arith.constant 0 : index
    %c0_7 = arith.constant 0 : index
    %9 = vector.load %arg3[%c0_6, %c0_7] : memref<128x128xf32, #tpu.memory_space<vmem>>, vector<128x128xf32>
    %cst_8 = arith.constant dense<0.000000e+00> : vector<8x128xf32>
    %10 = tpu.matmul %8, %9, %cst_8 {dimension_numbers = #tpu.dot_dimension_numbers<[1], [0], [0], [1], [0, 0, 1, 1], [], []>} : vector<8x128xf32>, vector<128x128xf32>, vector<8x128xf32> -> vector<8x128xf32>
    %11 = vector.extract_strided_slice %1 {offsets = [1, 0], sizes = [1, 128], strides = [1, 1]} : vector<8x128xf32> to vector<1x128xf32>
    %12 = vector.broadcast %11 : vector<1x128xf32> to vector<8x128xf32>
    %13 = arith.addf %10, %12 : vector<8x128xf32>
    %cst_9 = arith.constant 0.000000e+00 : f32
    %14 = vector.broadcast %cst_9 : f32 to vector<8x128xf32>
    %15 = arith.maximumf %13, %14 : vector<8x128xf32>
    %c0_10 = arith.constant 0 : index
    %c0_11 = arith.constant 0 : index
    %16 = vector.load %arg4[%c0_10, %c0_11] : memref<128x128xf32, #tpu.memory_space<vmem>>, vector<128x128xf32>
    %cst_12 = arith.constant dense<0.000000e+00> : vector<8x128xf32>
    %17 = tpu.matmul %15, %16, %cst_12 {dimension_numbers = #tpu.dot_dimension_numbers<[1], [0], [0], [1], [0, 0, 1, 1], [], []>} : vector<8x128xf32>, vector<128x128xf32>, vector<8x128xf32> -> vector<8x128xf32>
    %18 = vector.extract_strided_slice %17 {offsets = [0, 0], sizes = [8, 4], strides = [1, 1]} : vector<8x128xf32> to vector<8x4xf32>
    %19 = vector.extract_strided_slice %1 {offsets = [2, 0], sizes = [1, 4], strides = [1, 1]} : vector<8x128xf32> to vector<1x4xf32>
    %20 = vector.broadcast %19 : vector<1x4xf32> to vector<8x4xf32>
    %21 = arith.addf %18, %20 : vector<8x4xf32>
    %22 = vector.extract_strided_slice %1 {offsets = [3, 0], sizes = [1, 4], strides = [1, 1]} : vector<8x128xf32> to vector<1x4xf32>
    %23 = math.tanh %21 : vector<8x4xf32>
    %24 = vector.broadcast %22 : vector<1x4xf32> to vector<8x4xf32>
    %25 = arith.mulf %24, %23 : vector<8x4xf32>
    %c0_13 = arith.constant 0 : index
    %c0_14 = arith.constant 0 : index
    %26 = vector.load %arg6[%c0_13, %c0_14] : memref<8x4xf32, #tpu.memory_space<vmem>>, vector<8x4xf32>
    tpu.vector_store %arg6[%c0_13, %c0_14], %25 {strides = array<i32>} : memref<8x4xf32, #tpu.memory_space<vmem>>, vector<8x4xf32>,
    return
  }
  func.func @transform_0(%arg0: i32) -> (i32, i32) {
    %c0_i32 = arith.constant 0 : i32
    %c0_i32_0 = arith.constant 0 : i32
    return %arg0, %c0_i32 : i32, i32
  }
  func.func @transform_1(%arg0: i32) -> (i32, i32) {
    %c0_i32 = arith.constant 0 : i32
    %c0_i32_0 = arith.constant 0 : i32
    %c0_i32_1 = arith.constant 0 : i32
    return %c0_i32, %c0_i32_0 : i32, i32
  }
  func.func @transform_2(%arg0: i32) -> (i32, i32) {
    %c0_i32 = arith.constant 0 : i32
    %c0_i32_0 = arith.constant 0 : i32
    %c0_i32_1 = arith.constant 0 : i32
    return %c0_i32, %c0_i32_0 : i32, i32
  }
  func.func @transform_3(%arg0: i32) -> (i32, i32) {
    %c0_i32 = arith.constant 0 : i32
    %c0_i32_0 = arith.constant 0 : i32
    %c0_i32_1 = arith.constant 0 : i32
    return %c0_i32, %c0_i32_0 : i32, i32
  }
  func.func @transform_4(%arg0: i32) -> (i32, i32) {
    %c0_i32 = arith.constant 0 : i32
    %c0_i32_0 = arith.constant 0 : i32
    %c0_i32_1 = arith.constant 0 : i32
    return %c0_i32, %c0_i32_0 : i32, i32
  }
  func.func @transform_5(%arg0: i32) -> (i32, i32) {
    %c0_i32 = arith.constant 0 : i32
    %c0_i32_0 = arith.constant 0 : i32
    return %arg0, %c0_i32 : i32, i32
  }
}

module attributes {stable_mosaic.version = 11 : i64} {
  func.func @actor_kernel(%arg0: i32, %arg1: memref<8x8xf32, #tpu.memory_space<vmem>>, %arg2: memref<8x128xf32, #tpu.memory_space<vmem>>, %arg3: memref<128x128xf32, #tpu.memory_space<vmem>>, %arg4: memref<128x128xf32, #tpu.memory_space<vmem>>, %arg5: memref<8x128xf32, #tpu.memory_space<vmem>>, %arg6: memref<8x4xf32, #tpu.memory_space<vmem>>) attributes {dimension_semantics = [#tpu.dimension_semantics<parallel>], iteration_bounds = array<i64: 1>, scalar_prefetch = 0 : i64, scratch_operands = 0 : i64, tpu.core_type = #tpu.core_type<tc>, window_params = [{transform_indices = @transform_0, window_bounds = array<i64: 8, 8>}, {pipeline_mode = #tpu.pipeline_mode<synchronous>, transform_indices = @transform_1, window_bounds = array<i64: 8, 128>}, {pipeline_mode = #tpu.pipeline_mode<synchronous>, transform_indices = @transform_2, window_bounds = array<i64: 128, 128>}, {pipeline_mode = #tpu.pipeline_mode<synchronous>, transform_indices = @transform_3, window_bounds = array<i64: 128, 128>}, {pipeline_mode = #tpu.pipeline_mode<synchronous>, transform_indices = @transform_4, window_bounds = array<i64: 8, 128>}, {transform_indices = @transform_5, window_bounds = array<i64: 8, 4>}]} {
    %c0 = arith.constant 0 : index
    %c0_0 = arith.constant 0 : index
    %0 = vector.load %arg1[%c0, %c0_0] : memref<8x8xf32, #tpu.memory_space<vmem>>, vector<8x8xf32>
    %c0_1 = arith.constant 0 : index
    %c0_2 = arith.constant 0 : index
    %1 = vector.load %arg5[%c0_1, %c0_2] : memref<8x128xf32, #tpu.memory_space<vmem>>, vector<8x128xf32>
    %c0_3 = arith.constant 0 : index
    %c0_4 = arith.constant 0 : index
    %2 = vector.load %arg2[%c0_3, %c0_4] : memref<8x128xf32, #tpu.memory_space<vmem>>, vector<8x128xf32>
    %cst = arith.constant dense<0.000000e+00> : vector<8x128xf32>
    %3 = tpu.matmul %0, %2, %cst {dimension_numbers = #tpu.dot_dimension_numbers<[1], [0], [0], [1], [0, 0, 1, 1], [], []>} : vector<8x8xf32>, vector<8x128xf32>, vector<8x128xf32> -> vector<8x128xf32>
    %4 = vector.extract_strided_slice %1 {offsets = [0, 0], sizes = [1, 128], strides = [1, 1]} : vector<8x128xf32> to vector<1x128xf32>
    %5 = vector.broadcast %4 : vector<1x128xf32> to vector<8x128xf32>
    %6 = arith.addf %3, %5 : vector<8x128xf32>
    %cst_5 = arith.constant 0.000000e+00 : f32
    %7 = vector.broadcast %cst_5 : f32 to vector<8x128xf32>
    %8 = arith.maximumf %6, %7 : vector<8x128xf32>
    %c0_6 = arith.constant 0 : index
    %c0_7 = arith.constant 0 : index
    %9 = vector.load %arg3[%c0_6, %c0_7] : memref<128x128xf32, #tpu.memory_space<vmem>>, vector<128x128xf32>
    %cst_8 = arith.constant dense<0.000000e+00> : vector<8x128xf32>
    %10 = tpu.matmul %8, %9, %cst_8 {dimension_numbers = #tpu.dot_dimension_numbers<[1], [0], [0], [1], [0, 0, 1, 1], [], []>} : vector<8x128xf32>, vector<128x128xf32>, vector<8x128xf32> -> vector<8x128xf32>
    %11 = vector.extract_strided_slice %1 {offsets = [1, 0], sizes = [1, 128], strides = [1, 1]} : vector<8x128xf32> to vector<1x128xf32>
    %12 = vector.broadcast %11 : vector<1x128xf32> to vector<8x128xf32>
    %13 = arith.addf %10, %12 : vector<8x128xf32>
    %cst_9 = arith.constant 0.000000e+00 : f32
    %14 = vector.broadcast %cst_9 : f32 to vector<8x128xf32>
    %15 = arith.maximumf %13, %14 : vector<8x128xf32>
    %c0_10 = arith.constant 0 : index
    %c0_11 = arith.constant 0 : index
    %16 = vector.load %arg4[%c0_10, %c0_11] : memref<128x128xf32, #tpu.memory_space<vmem>>, vector<128x128xf32>
    %cst_12 = arith.constant dense<0.000000e+00> : vector<8x128xf32>
    %17 = tpu.matmul %15, %16, %cst_12 {dimension_numbers = #tpu.dot_dimension_numbers<[1], [0], [0], [1], [0, 0, 1, 1], [], []>} : vector<8x128xf32>, vector<128x128xf32>, vector<8x128xf32> -> vector<8x128xf32>
    %18 = vector.extract_strided_slice %17 {offsets = [0, 0], sizes = [8, 4], strides = [1, 1]} : vector<8x128xf32> to vector<8x4xf32>
    %19 = vector.extract_strided_slice %1 {offsets = [2, 0], sizes = [1, 4], strides = [1, 1]} : vector<8x128xf32> to vector<1x4xf32>
    %20 = vector.broadcast %19 : vector<1x4xf32> to vector<8x4xf32>
    %21 = arith.addf %18, %20 : vector<8x4xf32>
    %22 = vector.extract_strided_slice %1 {offsets = [3, 0], sizes = [1, 4], strides = [1, 1]} : vector<8x128xf32> to vector<1x4xf32>
    %23 = math.tanh %21 : vector<8x4xf32>
    %24 = vector.broadcast %22 : vector<1x4xf32> to vector<8x4xf32>
    %25 = arith.mulf %24, %23 : vector<8x4xf32>
    %c0_13 = arith.constant 0 : index
    %c0_14 = arith.constant 0 : index
    %26 = vector.load %arg6[%c0_13, %c0_14] : memref<8x4xf32, #tpu.memory_space<vmem>>, vector<8x4xf32>
    tpu.vector_store %arg6[%c0_13, %c0_14], %25 {strides = array<i32>} : memref<8x4xf32, #tpu.memory_space<vmem>>, vector<8x4xf32>,
    return
  }
  func.func @transform_0(%arg0: i32) -> (i32, i32) {
    %c0_i32 = arith.constant 0 : i32
    %c0_i32_0 = arith.constant 0 : i32
    return %arg0, %c0_i32 : i32, i32
  }
  func.func @transform_1(%arg0: i32) -> (i32, i32) {
    %c0_i32 = arith.constant 0 : i32
    %c0_i32_0 = arith.constant 0 : i32
    %c0_i32_1 = arith.constant 0 : i32
    return %c0_i32, %c0_i32_0 : i32, i32
  }
  func.func @transform_2(%arg0: i32) -> (i32, i32) {
    %c0_i32 = arith.constant 0 : i32
    %c0_i32_0 = arith.constant 0 : i32
    %c0_i32_1 = arith.constant 0 : i32
    return %c0_i32, %c0_i32_0 : i32, i32
  }
  func.func @transform_3(%arg0: i32) -> (i32, i32) {
    %c0_i32 = arith.constant 0 : i32
    %c0_i32_0 = arith.constant 0 : i32
    %c0_i32_1 = arith.constant 0 : i32
    return %c0_i32, %c0_i32_0 : i32, i32
  }
  func.func @transform_4(%arg0: i32) -> (i32, i32) {
    %c0_i32 = arith.constant 0 : i32
    %c0_i32_0 = arith.constant 0 : i32
    %c0_i32_1 = arith.constant 0 : i32
    return %c0_i32, %c0_i32_0 : i32, i32
  }
  func.func @transform_5(%arg0: i32) -> (i32, i32) {
    %c0_i32 = arith.constant 0 : i32
    %c0_i32_0 = arith.constant 0 : i32
    return %arg0, %c0_i32 : i32, i32
  }
}

</mosaic_0001>

<llo_original>
// kernel: _actor_forward_impl.1
$region0: #{_actor_forward_impl.1}
  #allocation0 [shape = 'u32[]', space=smem, size = 0x4, offset = 0x4, fixed_abs, tag = 'smem constant byte address 0x4 - core index']
  #allocation1 [shape = 'u32[72,128]{1,0:T(1,128)}', space=vmem, size = 0x9000, scoped, tag = 'internal scratch']
  %s0 = inlined_call_operand.vmem [shape: f32[8,8], index: 0, kind: input, shape index: {}]
  %s1 = inlined_call_operand.vmem [shape: f32[8,128], index: 1, kind: input, shape index: {}]
  %s2 = inlined_call_operand.hbm [shape: f32[128,128], index: 2, kind: input, shape index: {}]
  %s3 = inlined_call_operand.hbm [shape: f32[128,128], index: 3, kind: input, shape index: {}]
  %s4 = inlined_call_operand.hbm [shape: f32[8,128], index: 4, kind: input, shape index: {}]
  %s5 = inlined_call_operand.vmem [shape: f32[8,4], index: 5, kind: output, shape index: {}]
  %s6 = sld [smem:[#allocation0]]
  $region42: #{_actor_forward_impl.1} parent=0
    _
  %s8 = ssub.s32 1, %s6
  %s9 = scalar_select 0, %s8, %s6
  $region1: #{_actor_forward_impl.1} parent=0
    #allocation2 [shape = 'u8[65536]{0}', space=vmem, size = 0x10000, scoped, tag = 'input window, operand 2, single buffered']
    #allocation3 [shape = 's32[1]{0}', space=sflag, size = 0x4, scoped, tag = 'scoped memory for _actor_forward_impl.1']
    #allocation4 [shape = 'u8[65536]{0}', space=vmem, size = 0x10000, scoped, tag = 'input window, operand 3, single buffered']
    #allocation5 [shape = 's32[1]{0}', space=sflag, size = 0x4, scoped, tag = 'scoped memory for _actor_forward_impl.1']
    #allocation6 [shape = 'u8[4096]{0}', space=vmem, size = 0x1000, scoped, tag = 'input window, operand 4, single buffered']
    %10 = vsyncpa [#allocation3], 0
    %11 = vsyncpa [#allocation5], 0
    // Predicated region
    $region2: #{_actor_forward_impl.1} parent=1 // pred_check
      _
    $region3: #{_actor_forward_impl.1} parent=1 // pred_check_branch
      %13 = sbr.rel (0) target = $region5
    $region4: #{_actor_forward_impl.1} parent=1 // pred_region
      _
    $region5: #{_actor_forward_impl.1} parent=1 // pred_fallthru
      _
    // Predicated region
    $region6: #{_actor_forward_impl.1} parent=1 // pred_check
      _
    $region7: #{_actor_forward_impl.1} parent=1 // pred_check_branch
      %15 = sbr.rel (0) target = $region9
    $region8: #{_actor_forward_impl.1} parent=1 // pred_region
      _
    $region9: #{_actor_forward_impl.1} parent=1 // pred_fallthru
      _
    // Predicated region
    $region10: #{_actor_forward_impl.1} parent=1 // pred_check
      _
    $region11: #{_actor_forward_impl.1} parent=1 // pred_check_branch
      %17 = sbr.rel (0) target = $region13
    $region12: #{_actor_forward_impl.1} parent=1 // pred_region
      %19 = vsyncadd [#allocation3], 0
      %s20 = sshll.u32 %s2, 4
      %s21 = int_to_ptr.hbm [resolvable:$true] %s20
      %s22 = sshll.u32 [#allocation2], 4
      %s23 = int_to_ptr.vmem [resolvable:$true] %s22
      %28 = dma.hbm_to_vmem [thread:$0]  %s21, 2048, %s23, [#allocation3], 128, 128, 8
    $region13: #{_actor_forward_impl.1} parent=1 // pred_fallthru
      _
    // Predicated region
    $region14: #{_actor_forward_impl.1} parent=1 // pred_check
      _
    $region15: #{_actor_forward_impl.1} parent=1 // pred_check_branch
      %30 = sbr.rel (0) target = $region17
    $region16: #{_actor_forward_impl.1} parent=1 // pred_region
      %32 = vsyncadd [#allocation5], 0
      %s33 = sshll.u32 %s3, 4
      %s34 = int_to_ptr.hbm [resolvable:$true] %s33
      %s35 = sshll.u32 [#allocation4], 4
      %s36 = int_to_ptr.vmem [resolvable:$true] %s35
      %41 = dma.hbm_to_vmem [thread:$0]  %s34, 2048, %s36, [#allocation5], 128, 128, 8
    $region17: #{_actor_forward_impl.1} parent=1 // pred_fallthru
      _
    // Predicated region
    $region18: #{_actor_forward_impl.1} parent=1 // pred_check
      _
    $region19: #{_actor_forward_impl.1} parent=1 // pred_check_branch
      %43 = sbr.rel (0) target = $region21
    $region20: #{_actor_forward_impl.1} parent=1 // pred_region
      %45 = vsyncadd [#allocation5], 0
      %s47 = sshll.u32 %s4, 4
      %s48 = int_to_ptr.hbm [resolvable:$true] %s47
      %s49 = sshll.u32 [#allocation6], 4
      %s50 = int_to_ptr.vmem [resolvable:$true] %s49
      %52 = dma.hbm_to_vmem [thread:$0]  %s48, 128, %s50, [#allocation5]
    $region21: #{_actor_forward_impl.1} parent=1 // pred_fallthru
      _
    // Predicated region
    $region22: #{_actor_forward_impl.1} parent=1 // pred_check
      _
    $region23: #{_actor_forward_impl.1} parent=1 // pred_check_branch
      %54 = sbr.rel (0) target = $region25
    $region24: #{_actor_forward_impl.1} parent=1 // pred_region
      %56 = dma.done [#allocation3], 2048
    $region25: #{_actor_forward_impl.1} parent=1 // pred_fallthru
      _
    // Predicated region
    $region26: #{_actor_forward_impl.1} parent=1 // pred_check
      _
    $region27: #{_actor_forward_impl.1} parent=1 // pred_check_branch
      %58 = sbr.rel (0) target = $region29
    $region28: #{_actor_forward_impl.1} parent=1 // pred_region
      %60 = dma.done [#allocation5], 2048
    $region29: #{_actor_forward_impl.1} parent=1 // pred_fallthru
      _
    // Predicated region
    $region30: #{_actor_forward_impl.1} parent=1 // pred_check
      _
    $region31: #{_actor_forward_impl.1} parent=1 // pred_check_branch
      %62 = sbr.rel (0) target = $region33
    $region32: #{_actor_forward_impl.1} parent=1 // pred_region
      %64 = dma.done [#allocation5], 128
    $region33: #{_actor_forward_impl.1} parent=1 // pred_fallthru
      _
    %v65 = vld [vmem:[%s0] sm:$0xff]
    %v66 = vld [vmem:[#allocation6] sm:$0xff]
    %v67 = vld [vmem:[%s1] sm:$0xff]
    %v68 = vperm.slane %v66, 0
    %vm69 = vcmask 64512
    %v71 = vsel %vm69, %v65, 0
    %73 = vmatpush.msra.mxu0 0.0
    %74 = vmatpush.msra.mxu0 0.0
    %75 = vmatpush.msra.mxu0 0.0
    %76 = vmatpush.msra.mxu0 0.0
    %77 = vmatpush.msra.mxu0 0.0
    %78 = vmatpush.msra.mxu0 0.0
    %79 = vmatpush.msra.mxu0 0.0
    %80 = vmatpush.msra.mxu0 0.0
    %81 = vmatpush.msra.mxu0 0.0
    %82 = vmatpush.msra.mxu0 0.0
    %83 = vmatpush.msra.mxu0 0.0
    %84 = vmatpush.msra.mxu0 0.0
    %85 = vmatpush.msra.mxu0 0.0
    %86 = vmatpush.msra.mxu0 0.0
    %87 = vmatpush.msra.mxu0 0.0
    %88 = vmatpush.msra.mxu0 %v67
    %89 = vmatmul.f32.gmra.mxu0 %v71
    %v90 = vpop.f32.mrf.mxu0
    %v91 = vadd.f32 %v68, %v90
    %92 = vdwg.mxu0
    %v93 = vmax.f32 %v91, 0.0
    %v94 = vld [vmem:[#allocation2] sm:$0xff]
    %v95 = vld [vmem:[#allocation2 + $0x8] sm:$0xff]
    %v96 = vld [vmem:[#allocation2 + $0x10] sm:$0xff]
    %v97 = vld [vmem:[#allocation2 + $0x18] sm:$0xff]
    %v98 = vld [vmem:[#allocation2 + $0x20] sm:$0xff]
    %v99 = vld [vmem:[#allocation2 + $0x28] sm:$0xff]
    %v100 = vld [vmem:[#allocation2 + $0x30] sm:$0xff]
    %v101 = vld [vmem:[#allocation2 + $0x38] sm:$0xff]
    %v102 = vld [vmem:[#allocation2 + $0x40] sm:$0xff]
    %v103 = vld [vmem:[#allocation2 + $0x48] sm:$0xff]
    %v104 = vld [vmem:[#allocation2 + $0x50] sm:$0xff]
    %v105 = vld [vmem:[#allocation2 + $0x58] sm:$0xff]
    %v106 = vld [vmem:[#allocation2 + $0x60] sm:$0xff]
    %v107 = vld [vmem:[#allocation2 + $0x68] sm:$0xff]
    %v108 = vld [vmem:[#allocation2 + $0x70] sm:$0xff]
    %v109 = vld [vmem:[#allocation2 + $0x78] sm:$0xff]
    %v110 = vperm.slane %v66, 1
    %111 = vmatpush.msra.mxu0 %v109
    %112 = vmatpush.msra.mxu0 %v108
    %113 = vmatpush.msra.mxu0 %v107
    %114 = vmatpush.msra.mxu0 %v106
    %115 = vmatpush.msra.mxu0 %v105
    %116 = vmatpush.msra.mxu0 %v104
    %117 = vmatpush.msra.mxu0 %v103
    %118 = vmatpush.msra.mxu0 %v102
    %119 = vmatpush.msra.mxu0 %v101
    %120 = vmatpush.msra.mxu0 %v100
    %121 = vmatpush.msra.mxu0 %v99
    %122 = vmatpush.msra.mxu0 %v98
    %123 = vmatpush.msra.mxu0 %v97
    %124 = vmatpush.msra.mxu0 %v96
    %125 = vmatpush.msra.mxu0 %v95
    %126 = vmatpush.msra.mxu0 %v94
    %127 = vmatmul.f32.gmra.mxu0 %v93
    %v128 = vpop.f32.mrf.mxu0
    %v129 = vadd.f32 %v110, %v128
    %130 = vdwg.mxu0
    %v131 = vmax.f32 %v129, 0.0
    %v132 = vld [vmem:[#allocation4] sm:$0xff]
    %v133 = vld [vmem:[#allocation4 + $0x8] sm:$0xff]
    %v134 = vld [vmem:[#allocation4 + $0x10] sm:$0xff]
    %v135 = vld [vmem:[#allocation4 + $0x18] sm:$0xff]
    %v136 = vld [vmem:[#allocation4 + $0x20] sm:$0xff]
    %v137 = vld [vmem:[#allocation4 + $0x28] sm:$0xff]
    %v138 = vld [vmem:[#allocation4 + $0x30] sm:$0xff]
    %v139 = vld [vmem:[#allocation4 + $0x38] sm:$0xff]
    %v140 = vld [vmem:[#allocation4 + $0x40] sm:$0xff]
    %v141 = vld [vmem:[#allocation4 + $0x48] sm:$0xff]
    %v142 = vld [vmem:[#allocation4 + $0x50] sm:$0xff]
    %v143 = vld [vmem:[#allocation4 + $0x58] sm:$0xff]
    %v144 = vld [vmem:[#allocation4 + $0x60] sm:$0xff]
    %v145 = vld [vmem:[#allocation4 + $0x68] sm:$0xff]
    %v146 = vld [vmem:[#allocation4 + $0x70] sm:$0xff]
    %v147 = vld [vmem:[#allocation4 + $0x78] sm:$0xff]
    %148 = vmatpush.msra.mxu0 %v147
    %149 = vmatpush.msra.mxu0 %v146
    %150 = vmatpush.msra.mxu0 %v145
    %151 = vmatpush.msra.mxu0 %v144
    %152 = vmatpush.msra.mxu0 %v143
    %153 = vmatpush.msra.mxu0 %v142
    %154 = vmatpush.msra.mxu0 %v141
    %155 = vmatpush.msra.mxu0 %v140
    %156 = vmatpush.msra.mxu0 %v139
    %157 = vmatpush.msra.mxu0 %v138
    %158 = vmatpush.msra.mxu0 %v137
    %159 = vmatpush.msra.mxu0 %v136
    %160 = vmatpush.msra.mxu0 %v135
    %161 = vmatpush.msra.mxu0 %v134
    %162 = vmatpush.msra.mxu0 %v133
    %163 = vmatpush.msra.mxu0 %v132
    %164 = vmatmul.f32.gmra.mxu0 %v131
    %v165 = vpop.f32.mrf.mxu0
    %v166 = vadd.f32 0.0, %v165
    %167 = vdwg.mxu0
    %v168 = vperm.slane %v66, 2
    %v169 = vadd.f32 %v166, %v168
    %v170 = vtanh.pop %v169
    %v171 = vperm.slane %v66, 3
    %v172 = vmul.f32 %v171, %v170
    %vm173 = vcmask 31744
    %174 = vst.msk [vmem:[%s5] sm:$0xff] %vm173, %v172
    // Predicated region
    $region34: #{_actor_forward_impl.1} parent=1 // pred_check
      _
    $region35: #{_actor_forward_impl.1} parent=1 // pred_check_branch
      %176 = sbr.rel (0) target = $region37
    $region36: #{_actor_forward_impl.1} parent=1 // pred_region
      _
    $region37: #{_actor_forward_impl.1} parent=1 // pred_fallthru
      _
    // Predicated region
    $region38: #{_actor_forward_impl.1} parent=1 // pred_check
      _
    $region39: #{_actor_forward_impl.1} parent=1 // pred_check_branch
      %178 = sbr.rel (0) target = $region41
    $region40: #{_actor_forward_impl.1} parent=1 // pred_region
      _
    $region41: #{_actor_forward_impl.1} parent=1 // pred_fallthru
      _
    %179 = vsyncpa [#allocation3], 1
    %180 = vsyncpa [#allocation5], 1

// kernel: _actor_forward_impl.1
$region0: #{_actor_forward_impl.1}
  #allocation0 [shape = 'u32[]', space=smem, size = 0x4, offset = 0x4, fixed_abs, tag = 'smem constant byte address 0x4 - core index']
  #allocation1 [shape = 'u32[72,128]{1,0:T(1,128)}', space=vmem, size = 0x9000, scoped, tag = 'internal scratch']
  %s0 = inlined_call_operand.vmem [shape: f32[8,8], index: 0, kind: input, shape index: {}]
  %s1 = inlined_call_operand.vmem [shape: f32[8,128], index: 1, kind: input, shape index: {}]
  %s2 = inlined_call_operand.hbm [shape: f32[128,128], index: 2, kind: input, shape index: {}]
  %s3 = inlined_call_operand.hbm [shape: f32[128,128], index: 3, kind: input, shape index: {}]
  %s4 = inlined_call_operand.hbm [shape: f32[8,128], index: 4, kind: input, shape index: {}]
  %s5 = inlined_call_operand.vmem [shape: f32[8,4], index: 5, kind: output, shape index: {}]
  %s6 = sld [smem:[#allocation0]]
  $region42: #{_actor_forward_impl.1} parent=0
    _
  %s8 = ssub.s32 1, %s6
  %s9 = scalar_select 0, %s8, %s6
  $region1: #{_actor_forward_impl.1} parent=0
    #allocation2 [shape = 'u8[65536]{0}', space=vmem, size = 0x10000, scoped, tag = 'input window, operand 2, single buffered']
    #allocation3 [shape = 's32[1]{0}', space=sflag, size = 0x4, scoped, tag = 'scoped memory for _actor_forward_impl.1']
    #allocation4 [shape = 'u8[65536]{0}', space=vmem, size = 0x10000, scoped, tag = 'input window, operand 3, single buffered']
    #allocation5 [shape = 's32[1]{0}', space=sflag, size = 0x4, scoped, tag = 'scoped memory for _actor_forward_impl.1']
    #allocation6 [shape = 'u8[4096]{0}', space=vmem, size = 0x1000, scoped, tag = 'input window, operand 4, single buffered']
    %10 = vsyncpa [#allocation3], 0
    %11 = vsyncpa [#allocation5], 0
    // Predicated region
    $region2: #{_actor_forward_impl.1} parent=1 // pred_check
      _
    $region3: #{_actor_forward_impl.1} parent=1 // pred_check_branch
      %13 = sbr.rel (0) target = $region5
    $region4: #{_actor_forward_impl.1} parent=1 // pred_region
      _
    $region5: #{_actor_forward_impl.1} parent=1 // pred_fallthru
      _
    // Predicated region
    $region6: #{_actor_forward_impl.1} parent=1 // pred_check
      _
    $region7: #{_actor_forward_impl.1} parent=1 // pred_check_branch
      %15 = sbr.rel (0) target = $region9
    $region8: #{_actor_forward_impl.1} parent=1 // pred_region
      _
    $region9: #{_actor_forward_impl.1} parent=1 // pred_fallthru
      _
    // Predicated region
    $region10: #{_actor_forward_impl.1} parent=1 // pred_check
      _
    $region11: #{_actor_forward_impl.1} parent=1 // pred_check_branch
      %17 = sbr.rel (0) target = $region13
    $region12: #{_actor_forward_impl.1} parent=1 // pred_region
      %19 = vsyncadd [#allocation3], 0
      %s20 = sshll.u32 %s2, 4
      %s21 = int_to_ptr.hbm [resolvable:$true] %s20
      %s22 = sshll.u32 [#allocation2], 4
      %s23 = int_to_ptr.vmem [resolvable:$true] %s22
      %28 = dma.hbm_to_vmem [thread:$0]  %s21, 2048, %s23, [#allocation3], 128, 128, 8
    $region13: #{_actor_forward_impl.1} parent=1 // pred_fallthru
      _
    // Predicated region
    $region14: #{_actor_forward_impl.1} parent=1 // pred_check
      _
    $region15: #{_actor_forward_impl.1} parent=1 // pred_check_branch
      %30 = sbr.rel (0) target = $region17
    $region16: #{_actor_forward_impl.1} parent=1 // pred_region
      %32 = vsyncadd [#allocation5], 0
      %s33 = sshll.u32 %s3, 4
      %s34 = int_to_ptr.hbm [resolvable:$true] %s33
      %s35 = sshll.u32 [#allocation4], 4
      %s36 = int_to_ptr.vmem [resolvable:$true] %s35
      %41 = dma.hbm_to_vmem [thread:$0]  %s34, 2048, %s36, [#allocation5], 128, 128, 8
    $region17: #{_actor_forward_impl.1} parent=1 // pred_fallthru
      _
    // Predicated region
    $region18: #{_actor_forward_impl.1} parent=1 // pred_check
      _
    $region19: #{_actor_forward_impl.1} parent=1 // pred_check_branch
      %43 = sbr.rel (0) target = $region21
    $region20: #{_actor_forward_impl.1} parent=1 // pred_region
      %45 = vsyncadd [#allocation5], 0
      %s47 = sshll.u32 %s4, 4
      %s48 = int_to_ptr.hbm [resolvable:$true] %s47
      %s49 = sshll.u32 [#allocation6], 4
      %s50 = int_to_ptr.vmem [resolvable:$true] %s49
      %52 = dma.hbm_to_vmem [thread:$0]  %s48, 128, %s50, [#allocation5]
    $region21: #{_actor_forward_impl.1} parent=1 // pred_fallthru
      _
    // Predicated region
    $region22: #{_actor_forward_impl.1} parent=1 // pred_check
      _
    $region23: #{_actor_forward_impl.1} parent=1 // pred_check_branch
      %54 = sbr.rel (0) target = $region25
    $region24: #{_actor_forward_impl.1} parent=1 // pred_region
      %56 = dma.done [#allocation3], 2048
    $region25: #{_actor_forward_impl.1} parent=1 // pred_fallthru
      _
    // Predicated region
    $region26: #{_actor_forward_impl.1} parent=1 // pred_check
      _
    $region27: #{_actor_forward_impl.1} parent=1 // pred_check_branch
      %58 = sbr.rel (0) target = $region29
    $region28: #{_actor_forward_impl.1} parent=1 // pred_region
      %60 = dma.done [#allocation5], 2048
    $region29: #{_actor_forward_impl.1} parent=1 // pred_fallthru
      _
    // Predicated region
    $region30: #{_actor_forward_impl.1} parent=1 // pred_check
      _
    $region31: #{_actor_forward_impl.1} parent=1 // pred_check_branch
      %62 = sbr.rel (0) target = $region33
    $region32: #{_actor_forward_impl.1} parent=1 // pred_region
      %64 = dma.done [#allocation5], 128
    $region33: #{_actor_forward_impl.1} parent=1 // pred_fallthru
      _
    %v65 = vld [vmem:[%s0] sm:$0xff]
    %v66 = vld [vmem:[#allocation6] sm:$0xff]
    %v67 = vld [vmem:[%s1] sm:$0xff]
    %v68 = vperm.slane %v66, 0
    %vm69 = vcmask 64512
    %v71 = vsel %vm69, %v65, 0
    %73 = vmatpush.msra.mxu0 0.0
    %74 = vmatpush.msra.mxu0 0.0
    %75 = vmatpush.msra.mxu0 0.0
    %76 = vmatpush.msra.mxu0 0.0
    %77 = vmatpush.msra.mxu0 0.0
    %78 = vmatpush.msra.mxu0 0.0
    %79 = vmatpush.msra.mxu0 0.0
    %80 = vmatpush.msra.mxu0 0.0
    %81 = vmatpush.msra.mxu0 0.0
    %82 = vmatpush.msra.mxu0 0.0
    %83 = vmatpush.msra.mxu0 0.0
    %84 = vmatpush.msra.mxu0 0.0
    %85 = vmatpush.msra.mxu0 0.0
    %86 = vmatpush.msra.mxu0 0.0
    %87 = vmatpush.msra.mxu0 0.0
    %88 = vmatpush.msra.mxu0 %v67
    %89 = vmatmul.f32.gmra.mxu0 %v71
    %v90 = vpop.f32.mrf.mxu0
    %v91 = vadd.f32 %v68, %v90
    %92 = vdwg.mxu0
    %v93 = vmax.f32 %v91, 0.0
    %v94 = vld [vmem:[#allocation2] sm:$0xff]
    %v95 = vld [vmem:[#allocation2 + $0x8] sm:$0xff]
    %v96 = vld [vmem:[#allocation2 + $0x10] sm:$0xff]
    %v97 = vld [vmem:[#allocation2 + $0x18] sm:$0xff]
    %v98 = vld [vmem:[#allocation2 + $0x20] sm:$0xff]
    %v99 = vld [vmem:[#allocation2 + $0x28] sm:$0xff]
    %v100 = vld [vmem:[#allocation2 + $0x30] sm:$0xff]
    %v101 = vld [vmem:[#allocation2 + $0x38] sm:$0xff]
    %v102 = vld [vmem:[#allocation2 + $0x40] sm:$0xff]
    %v103 = vld [vmem:[#allocation2 + $0x48] sm:$0xff]
    %v104 = vld [vmem:[#allocation2 + $0x50] sm:$0xff]
    %v105 = vld [vmem:[#allocation2 + $0x58] sm:$0xff]
    %v106 = vld [vmem:[#allocation2 + $0x60] sm:$0xff]
    %v107 = vld [vmem:[#allocation2 + $0x68] sm:$0xff]
    %v108 = vld [vmem:[#allocation2 + $0x70] sm:$0xff]
    %v109 = vld [vmem:[#allocation2 + $0x78] sm:$0xff]
    %v110 = vperm.slane %v66, 1
    %111 = vmatpush.msra.mxu0 %v109
    %112 = vmatpush.msra.mxu0 %v108
    %113 = vmatpush.msra.mxu0 %v107
    %114 = vmatpush.msra.mxu0 %v106
    %115 = vmatpush.msra.mxu0 %v105
    %116 = vmatpush.msra.mxu0 %v104
    %117 = vmatpush.msra.mxu0 %v103
    %118 = vmatpush.msra.mxu0 %v102
    %119 = vmatpush.msra.mxu0 %v101
    %120 = vmatpush.msra.mxu0 %v100
    %121 = vmatpush.msra.mxu0 %v99
    %122 = vmatpush.msra.mxu0 %v98
    %123 = vmatpush.msra.mxu0 %v97
    %124 = vmatpush.msra.mxu0 %v96
    %125 = vmatpush.msra.mxu0 %v95
    %126 = vmatpush.msra.mxu0 %v94
    %127 = vmatmul.f32.gmra.mxu0 %v93
    %v128 = vpop.f32.mrf.mxu0
    %v129 = vadd.f32 %v110, %v128
    %130 = vdwg.mxu0
    %v131 = vmax.f32 %v129, 0.0
    %v132 = vld [vmem:[#allocation4] sm:$0xff]
    %v133 = vld [vmem:[#allocation4 + $0x8] sm:$0xff]
    %v134 = vld [vmem:[#allocation4 + $0x10] sm:$0xff]
    %v135 = vld [vmem:[#allocation4 + $0x18] sm:$0xff]
    %v136 = vld [vmem:[#allocation4 + $0x20] sm:$0xff]
    %v137 = vld [vmem:[#allocation4 + $0x28] sm:$0xff]
    %v138 = vld [vmem:[#allocation4 + $0x30] sm:$0xff]
    %v139 = vld [vmem:[#allocation4 + $0x38] sm:$0xff]
    %v140 = vld [vmem:[#allocation4 + $0x40] sm:$0xff]
    %v141 = vld [vmem:[#allocation4 + $0x48] sm:$0xff]
    %v142 = vld [vmem:[#allocation4 + $0x50] sm:$0xff]
    %v143 = vld [vmem:[#allocation4 + $0x58] sm:$0xff]
    %v144 = vld [vmem:[#allocation4 + $0x60] sm:$0xff]
    %v145 = vld [vmem:[#allocation4 + $0x68] sm:$0xff]
    %v146 = vld [vmem:[#allocation4 + $0x70] sm:$0xff]
    %v147 = vld [vmem:[#allocation4 + $0x78] sm:$0xff]
    %148 = vmatpush.msra.mxu0 %v147
    %149 = vmatpush.msra.mxu0 %v146
    %150 = vmatpush.msra.mxu0 %v145
    %151 = vmatpush.msra.mxu0 %v144
    %152 = vmatpush.msra.mxu0 %v143
    %153 = vmatpush.msra.mxu0 %v142
    %154 = vmatpush.msra.mxu0 %v141
    %155 = vmatpush.msra.mxu0 %v140
    %156 = vmatpush.msra.mxu0 %v139
    %157 = vmatpush.msra.mxu0 %v138
    %158 = vmatpush.msra.mxu0 %v137
    %159 = vmatpush.msra.mxu0 %v136
    %160 = vmatpush.msra.mxu0 %v135
    %161 = vmatpush.msra.mxu0 %v134
    %162 = vmatpush.msra.mxu0 %v133
    %163 = vmatpush.msra.mxu0 %v132
    %164 = vmatmul.f32.gmra.mxu0 %v131
    %v165 = vpop.f32.mrf.mxu0
    %v166 = vadd.f32 0.0, %v165
    %167 = vdwg.mxu0
    %v168 = vperm.slane %v66, 2
    %v169 = vadd.f32 %v166, %v168
    %v170 = vtanh.pop %v169
    %v171 = vperm.slane %v66, 3
    %v172 = vmul.f32 %v171, %v170
    %vm173 = vcmask 31744
    %174 = vst.msk [vmem:[%s5] sm:$0xff] %vm173, %v172
    // Predicated region
    $region34: #{_actor_forward_impl.1} parent=1 // pred_check
      _
    $region35: #{_actor_forward_impl.1} parent=1 // pred_check_branch
      %176 = sbr.rel (0) target = $region37
    $region36: #{_actor_forward_impl.1} parent=1 // pred_region
      _
    $region37: #{_actor_forward_impl.1} parent=1 // pred_fallthru
      _
    // Predicated region
    $region38: #{_actor_forward_impl.1} parent=1 // pred_check
      _
    $region39: #{_actor_forward_impl.1} parent=1 // pred_check_branch
      %178 = sbr.rel (0) target = $region41
    $region40: #{_actor_forward_impl.1} parent=1 // pred_region
      _
    $region41: #{_actor_forward_impl.1} parent=1 // pred_fallthru
      _
    %179 = vsyncpa [#allocation3], 1
    %180 = vsyncpa [#allocation5], 1

</llo_original>
